<compile_context>
chip_gen: v6e
topology: v6e:2x2x1
jax: 0.10.0
libtpu: 0.0.40
codegen_flags: <defaults>
</compile_context>

<pallas_src>
import functools

import jax
import jax.numpy as jnp
from jax.experimental import pallas as pl
from jax.experimental.pallas import tpu as pltpu

_LANE = 128
_F32_BYTES = 4
# Target VMEM working-set budget (bytes). Conservative for v7x (64 MiB
# physical); well under v5e/v6e's 128 MiB physical.
_VMEM_BUDGET = 44 << 20


def _round_up(x, m):
    return ((x + m - 1) // m) * m


def _mlp_kernel(x_ref, w1_ref, b1_ref, w2_ref, b2_ref, w3_ref, b3_ref, o_ref):
    # Layer 1: Linear + ReLU. Cast LHS to the weight dtype so bf16 params hit
    # the bf16 MXU path; accumulate in f32; elementwise stays f32 (v5e-safe).
    h = jnp.dot(x_ref[...].astype(w1_ref.dtype), w1_ref[...],
                preferred_element_type=jnp.float32)
    h = jnp.maximum(h + b1_ref[...].astype(jnp.float32), 0.0)
    # Layer 2: Linear + ReLU
    h = jnp.dot(h.astype(w2_ref.dtype), w2_ref[...],
                preferred_element_type=jnp.float32)
    h = jnp.maximum(h + b2_ref[...].astype(jnp.float32), 0.0)
    # Layer 3: Linear (output layer, no activation with module defaults)
    y = jnp.dot(h.astype(w3_ref.dtype), w3_ref[...],
                preferred_element_type=jnp.float32)
    y = y + b3_ref[...].astype(jnp.float32)
    o_ref[...] = y.astype(o_ref.dtype)


def pad_mlp_params(w1, b1, w2, b2, w3, b3, *, param_dtype=None):
    """Pad (and optionally cast) parameters ONCE; reuse the result per call.

    wi: (D_{i-1}, D_i) = transposed nn.Linear weight; bi: (1, D_i).
    Feature dims are zero-padded to multiples of 128 (lane-dense, exact math).
    param_dtype=jnp.bfloat16 enables the fast bf16 MXU path on v6e/v7x.
    """
    def pad_mat(a):
        r, c = a.shape
        pr, pc = _round_up(r, _LANE) - r, _round_up(c, _LANE) - c
        return jnp.pad(a, ((0, pr), (0, pc))) if (pr or pc) else a

    def pad_bias(a):
        c = a.shape[1]
        pc = _round_up(c, _LANE) - c
        return jnp.pad(a, ((0, 0), (0, pc))) if pc else a

    out = (pad_mat(w1), pad_bias(b1),
           pad_mat(w2), pad_bias(b2),
           pad_mat(w3), pad_bias(b3))
    if param_dtype is not None:
        out = tuple(a.astype(param_dtype) for a in out)
    return out


def _vmem_bytes(bm, D0p, D1p, D2p, D3p, w_itemsize, x_itemsize):
    # Single-buffered resident weights + biases.
    weights = (D0p * D1p + D1p * D2p + D2p * D3p + D1p + D2p + D3p) * w_itemsize
    # Streamed x / out, double-buffered.
    streamed = 2 * bm * (D0p + D3p) * x_itemsize
    # f32 intermediate activations of the fused 3-dot chain (spill to VMEM).
    inter = bm * (D1p + D2p) * _F32_BYTES
    return weights + streamed + inter


@functools.partial(jax.jit, static_argnames=("out_dim", "bm"))
def mlp_forward(x, w1p, b1p, w2p, b2p, w3p, b3p, *, out_dim, bm=None):
    """Fused 3-layer MLP forward on pre-padded params (see pad_mlp_params).

    x: (B, D0) with D0 <= padded input dim. Returns (B, out_dim).
    """
    B, D0 = x.shape
    D0p, D1p = w1p.shape
    D2p, D3p = w2p.shape[1], w3p.shape[1]

    compute_dtype = w1p.dtype
    out_dtype = x.dtype
    w_isz = jnp.dtype(compute_dtype).itemsize

    # ---- batch tile selection ------------------------------------------
    # Never feed the MXU fewer than 128 rows. Small B -> one full-width grid
    # step; large B -> 512-row tiles (each step stays >= 256 rows), shrunk in
    # 128-row steps if the VMEM budget would be exceeded.
    if bm is None:
        bm = _round_up(min(B, 512), _LANE)
        while bm > _LANE and _vmem_bytes(bm, D0p, D1p, D2p, D3p,
                                         w_isz, w_isz) > _VMEM_BUDGET:
            bm -= _LANE
    bm = max(_LANE, _round_up(bm, _LANE))
    Bp = _round_up(B, bm)

    # Pad x (batch + feature) and cast to the weight dtype so the streamed
    # tile is lane-dense and layer 1 uses the intended MXU path.
    xp = x
    if (Bp - B) or (D0p - D0):
        xp = jnp.pad(xp, ((0, Bp - B), (0, D0p - D0)))
    xp = xp.astype(compute_dtype)

    resident = pl.Buffered(1)  # constant blocks: no second pipeline buffer
    in_specs = [
        pl.BlockSpec((bm, D0p), lambda i: (i, 0)),                         # x
        pl.BlockSpec((D0p, D1p), lambda i: (0, 0), pipeline_mode=resident),  # W1^T
        pl.BlockSpec((1, D1p), lambda i: (0, 0), pipeline_mode=resident),    # b1
        pl.BlockSpec((D1p, D2p), lambda i: (0, 0), pipeline_mode=resident),  # W2^T
        pl.BlockSpec((1, D2p), lambda i: (0, 0), pipeline_mode=resident),    # b2
        pl.BlockSpec((D2p, D3p), lambda i: (0, 0), pipeline_mode=resident),  # W3^T
        pl.BlockSpec((1, D3p), lambda i: (0, 0), pipeline_mode=resident),    # b3
    ]
    out_specs = pl.BlockSpec((bm, D3p), lambda i: (i, 0))

    need = _vmem_bytes(bm, D0p, D1p, D2p, D3p, w_isz, w_isz)
    vmem_limit = int(min(max(int(need * 1.25) + (4 << 20), 32 << 20), 60 << 20))

    flops = 2 * Bp * (D0p * D1p + D1p * D2p + D2p * D3p)
    bytes_accessed = (
        xp.size * xp.dtype.itemsize
        + sum(a.size * a.dtype.itemsize
              for a in (w1p, b1p, w2p, b2p, w3p, b3p))
        + Bp * D3p * jnp.dtype(out_dtype).itemsize
    )

    out = pl.pallas_call(
        _mlp_kernel,
        out_shape=jax.ShapeDtypeStruct((Bp, D3p), out_dtype),
        grid_spec=pl.GridSpec(grid=(Bp // bm,), in_specs=in_specs,
                              out_specs=out_specs),
        compiler_params=pltpu.CompilerParams(
            dimension_semantics=("parallel",),
            vmem_limit_bytes=vmem_limit),
        cost_estimate=pl.CostEstimate(
            flops=flops, transcendentals=0, bytes_accessed=bytes_accessed),
    )(xp, w1p, b1p, w2p, b2p, w3p, b3p)

    # Strip batch / output-dim padding.
    return out[:B, :out_dim]


def init_mlp_params(key, input_dim, hidden_size, output_dim):
    """Deterministic init mirroring nn.Linear; weights stored as (in, out)."""
    dims = [input_dim, *hidden_size, output_dim]
    params = []
    for i in range(len(dims) - 1):
        key, kw, kb = jax.random.split(key, 3)
        fan_in = dims[i]
        bound = 1.0 / (fan_in ** 0.5)
        w = jax.random.uniform(kw, (dims[i], dims[i + 1]), jnp.float32, -bound, bound)
        b = jax.random.uniform(kb, (1, dims[i + 1]), jnp.float32, -bound, bound)
        params.extend([w, b])
    return params


def mlp_reference(x, w1, b1, w2, b2, w3, b3):
    h = jnp.maximum(x @ w1 + b1, 0.0)
    h = jnp.maximum(h @ w2 + b2, 0.0)
    return h @ w3 + b3


# TODO(synk): dropout (dropout != -1) and discrim-sigmoid branches are inactive
# with the module defaults (dropout=-1, discrim=False) and are not implemented.

if __name__ == "__main__":
    # Small shapes consistent with the module: MLP(input_dim=32, output_dim=16,
    # hidden_size=(64, 48)), batch of 16 rows.
    batch = 16
    input_dim = 32
    hidden_size = (64, 48)
    output_dim = 16

    key = jax.random.PRNGKey(0)
    key, kx = jax.random.split(key)
    x = jax.random.normal(kx, (batch, input_dim), jnp.float32)

    params = init_mlp_params(key, input_dim, hidden_size, output_dim)

    # Pad parameters once (reused across calls) -- f32 here for an exact check;
    # pass param_dtype=jnp.bfloat16 for the v6e/v7x fast path.
    padded = pad_mlp_params(*params)

    out = mlp_forward(x, *padded, out_dim=output_dim)
    out = jax.block_until_ready(out)

    ref = mlp_reference(x, *params)
    assert out.shape == (batch, output_dim)
    assert jnp.allclose(out, ref, atol=1e-4, rtol=1e-4), "mismatch vs JAX reference"

    print("KERNEL_OK")
</pallas_src>

<mosaic_0001>
module attributes {stable_mosaic.version = 11 : i64} {
  func.func @_mlp_kernel(%arg0: i32, %arg1: memref<128x128xf32, #tpu.memory_space<vmem>>, %arg2: memref<128x128xf32, #tpu.memory_space<vmem>>, %arg3: memref<1x128xf32, #tpu.memory_space<vmem>>, %arg4: memref<128x128xf32, #tpu.memory_space<vmem>>, %arg5: memref<1x128xf32, #tpu.memory_space<vmem>>, %arg6: memref<128x128xf32, #tpu.memory_space<vmem>>, %arg7: memref<1x128xf32, #tpu.memory_space<vmem>>, %arg8: memref<128x128xf32, #tpu.memory_space<vmem>>) attributes {dimension_semantics = [#tpu.dimension_semantics<parallel>], iteration_bounds = array<i64: 1>, scalar_prefetch = 0 : i64, scratch_operands = 0 : i64, tpu.core_type = #tpu.core_type<tc>, window_params = [{transform_indices = @transform_0, window_bounds = array<i64: 128, 128>}, {pipeline_mode = #tpu.pipeline_mode<synchronous>, transform_indices = @transform_1, window_bounds = array<i64: 128, 128>}, {pipeline_mode = #tpu.pipeline_mode<synchronous>, transform_indices = @transform_2, window_bounds = array<i64: 1, 128>}, {pipeline_mode = #tpu.pipeline_mode<synchronous>, transform_indices = @transform_3, window_bounds = array<i64: 128, 128>}, {pipeline_mode = #tpu.pipeline_mode<synchronous>, transform_indices = @transform_4, window_bounds = array<i64: 1, 128>}, {pipeline_mode = #tpu.pipeline_mode<synchronous>, transform_indices = @transform_5, window_bounds = array<i64: 128, 128>}, {pipeline_mode = #tpu.pipeline_mode<synchronous>, transform_indices = @transform_6, window_bounds = array<i64: 1, 128>}, {transform_indices = @transform_7, window_bounds = array<i64: 128, 128>}]} {
    %c0 = arith.constant 0 : index
    %c0_0 = arith.constant 0 : index
    %0 = vector.load %arg1[%c0, %c0_0] : memref<128x128xf32, #tpu.memory_space<vmem>>, vector<128x128xf32>
    %c0_1 = arith.constant 0 : index
    %c0_2 = arith.constant 0 : index
    %1 = vector.load %arg2[%c0_1, %c0_2] : memref<128x128xf32, #tpu.memory_space<vmem>>, vector<128x128xf32>
    %cst = arith.constant dense<0.000000e+00> : vector<128x128xf32>
    %2 = tpu.matmul %0, %1, %cst {dimension_numbers = #tpu.dot_dimension_numbers<[1], [0], [0], [1], [0, 0, 1, 1], [], []>} : vector<128x128xf32>, vector<128x128xf32>, vector<128x128xf32> -> vector<128x128xf32>
    %c0_3 = arith.constant 0 : index
    %c0_4 = arith.constant 0 : index
    %3 = vector.load %arg3[%c0_3, %c0_4] : memref<1x128xf32, #tpu.memory_space<vmem>>, vector<1x128xf32>
    %4 = vector.broadcast %3 : vector<1x128xf32> to vector<128x128xf32>
    %5 = arith.addf %2, %4 : vector<128x128xf32>
    %cst_5 = arith.constant 0.000000e+00 : f32
    %6 = vector.broadcast %cst_5 : f32 to vector<128x128xf32>
    %7 = arith.maximumf %5, %6 : vector<128x128xf32>
    %c0_6 = arith.constant 0 : index
    %c0_7 = arith.constant 0 : index
    %8 = vector.load %arg4[%c0_6, %c0_7] : memref<128x128xf32, #tpu.memory_space<vmem>>, vector<128x128xf32>
    %cst_8 = arith.constant dense<0.000000e+00> : vector<128x128xf32>
    %9 = tpu.matmul %7, %8, %cst_8 {dimension_numbers = #tpu.dot_dimension_numbers<[1], [0], [0], [1], [0, 0, 1, 1], [], []>} : vector<128x128xf32>, vector<128x128xf32>, vector<128x128xf32> -> vector<128x128xf32>
    %c0_9 = arith.constant 0 : index
    %c0_10 = arith.constant 0 : index
    %10 = vector.load %arg5[%c0_9, %c0_10] : memref<1x128xf32, #tpu.memory_space<vmem>>, vector<1x128xf32>
    %11 = vector.broadcast %10 : vector<1x128xf32> to vector<128x128xf32>
    %12 = arith.addf %9, %11 : vector<128x128xf32>
    %cst_11 = arith.constant 0.000000e+00 : f32
    %13 = vector.broadcast %cst_11 : f32 to vector<128x128xf32>
    %14 = arith.maximumf %12, %13 : vector<128x128xf32>
    %c0_12 = arith.constant 0 : index
    %c0_13 = arith.constant 0 : index
    %15 = vector.load %arg6[%c0_12, %c0_13] : memref<128x128xf32, #tpu.memory_space<vmem>>, vector<128x128xf32>
    %cst_14 = arith.constant dense<0.000000e+00> : vector<128x128xf32>
    %16 = tpu.matmul %14, %15, %cst_14 {dimension_numbers = #tpu.dot_dimension_numbers<[1], [0], [0], [1], [0, 0, 1, 1], [], []>} : vector<128x128xf32>, vector<128x128xf32>, vector<128x128xf32> -> vector<128x128xf32>
    %c0_15 = arith.constant 0 : index
    %c0_16 = arith.constant 0 : index
    %17 = vector.load %arg7[%c0_15, %c0_16] : memref<1x128xf32, #tpu.memory_space<vmem>>, vector<1x128xf32>
    %18 = vector.broadcast %17 : vector<1x128xf32> to vector<128x128xf32>
    %19 = arith.addf %16, %18 : vector<128x128xf32>
    %c0_17 = arith.constant 0 : index
    %c0_18 = arith.constant 0 : index
    %20 = vector.load %arg8[%c0_17, %c0_18] : memref<128x128xf32, #tpu.memory_space<vmem>>, vector<128x128xf32>
    tpu.vector_store %arg8[%c0_17, %c0_18], %19 {strides = array<i32>} : memref<128x128xf32, #tpu.memory_space<vmem>>, vector<128x128xf32>,
    return
  }
  func.func @transform_0(%arg0: i32) -> (i32, i32) {
    %c0_i32 = arith.constant 0 : i32
    %c0_i32_0 = arith.constant 0 : i32
    return %arg0, %c0_i32 : i32, i32
  }
  func.func @transform_1(%arg0: i32) -> (i32, i32) {
    %c0_i32 = arith.constant 0 : i32
    %c0_i32_0 = arith.constant 0 : i32
    %c0_i32_1 = arith.constant 0 : i32
    return %c0_i32, %c0_i32_0 : i32, i32
  }
  func.func @transform_2(%arg0: i32) -> (i32, i32) {
    %c0_i32 = arith.constant 0 : i32
    %c0_i32_0 = arith.constant 0 : i32
    %c0_i32_1 = arith.constant 0 : i32
    return %c0_i32, %c0_i32_0 : i32, i32
  }
  func.func @transform_3(%arg0: i32) -> (i32, i32) {
    %c0_i32 = arith.constant 0 : i32
    %c0_i32_0 = arith.constant 0 : i32
    %c0_i32_1 = arith.constant 0 : i32
    return %c0_i32, %c0_i32_0 : i32, i32
  }
  func.func @transform_4(%arg0: i32) -> (i32, i32) {
    %c0_i32 = arith.constant 0 : i32
    %c0_i32_0 = arith.constant 0 : i32
    %c0_i32_1 = arith.constant 0 : i32
    return %c0_i32, %c0_i32_0 : i32, i32
  }
  func.func @transform_5(%arg0: i32) -> (i32, i32) {
    %c0_i32 = arith.constant 0 : i32
    %c0_i32_0 = arith.constant 0 : i32
    %c0_i32_1 = arith.constant 0 : i32
    return %c0_i32, %c0_i32_0 : i32, i32
  }
  func.func @transform_6(%arg0: i32) -> (i32, i32) {
    %c0_i32 = arith.constant 0 : i32
    %c0_i32_0 = arith.constant 0 : i32
    %c0_i32_1 = arith.constant 0 : i32
    return %c0_i32, %c0_i32_0 : i32, i32
  }
  func.func @transform_7(%arg0: i32) -> (i32, i32) {
    %c0_i32 = arith.constant 0 : i32
    %c0_i32_0 = arith.constant 0 : i32
    return %arg0, %c0_i32 : i32, i32
  }
}

</mosaic_0001>

<llo_original>
// kernel: mlp_forward.1
$region0: #{mlp_forward.1}
  #allocation0 [shape = 'u32[]', space=smem, size = 0x4, offset = 0x4, fixed_abs, tag = 'smem constant byte address 0x4 - core index']
  #allocation1 [shape = 'u32[144,128]{1,0:T(1,128)}', space=vmem, size = 0x12000, scoped, tag = 'internal scratch']
  %s0 = inlined_call_operand.vmem [shape: f32[128,128], index: 0, kind: input, shape index: {}]
  %s1 = inlined_call_operand.vmem [shape: f32[128,128], index: 1, kind: input, shape index: {}]
  %s2 = inlined_call_operand.vmem [shape: f32[1,128], index: 2, kind: input, shape index: {}]
  %s3 = inlined_call_operand.hbm [shape: f32[128,128], index: 3, kind: input, shape index: {}]
  %s4 = inlined_call_operand.vmem [shape: f32[1,128], index: 4, kind: input, shape index: {}]
  %s5 = inlined_call_operand.hbm [shape: f32[128,128], index: 5, kind: input, shape index: {}]
  %s6 = inlined_call_operand.vmem [shape: f32[1,128], index: 6, kind: input, shape index: {}]
  %s7 = inlined_call_operand.vmem [shape: f32[128,128], index: 7, kind: output, shape index: {}]
  %s8 = sld [smem:[#allocation0]]
  $region46: #{mlp_forward.1} parent=0
    _
  %s10 = ssub.s32 1, %s8
  %s11 = scalar_select 0, %s10, %s8
  $region1: #{mlp_forward.1} parent=0
    #allocation2 [shape = 'u8[65536]{0}', space=vmem, size = 0x10000, scoped, tag = 'input window, operand 3, single buffered']
    #allocation3 [shape = 's32[1]{0}', space=sflag, size = 0x4, scoped, tag = 'scoped memory for mlp_forward.1']
    #allocation4 [shape = 'u8[65536]{0}', space=vmem, size = 0x10000, scoped, tag = 'input window, operand 5, single buffered']
    #allocation5 [shape = 's32[1]{0}', space=sflag, size = 0x4, scoped, tag = 'scoped memory for mlp_forward.1']
    %12 = vsyncpa [#allocation3], 0
    %13 = vsyncpa [#allocation5], 0
    // Predicated region
    $region2: #{mlp_forward.1} parent=1 // pred_check
      _
    $region3: #{mlp_forward.1} parent=1 // pred_check_branch
      %15 = sbr.rel (0) target = $region5
    $region4: #{mlp_forward.1} parent=1 // pred_region
      _
    $region5: #{mlp_forward.1} parent=1 // pred_fallthru
      _
    // Predicated region
    $region6: #{mlp_forward.1} parent=1 // pred_check
      _
    $region7: #{mlp_forward.1} parent=1 // pred_check_branch
      %17 = sbr.rel (0) target = $region9
    $region8: #{mlp_forward.1} parent=1 // pred_region
      _
    $region9: #{mlp_forward.1} parent=1 // pred_fallthru
      _
    // Predicated region
    $region10: #{mlp_forward.1} parent=1 // pred_check
      _
    $region11: #{mlp_forward.1} parent=1 // pred_check_branch
      %19 = sbr.rel (0) target = $region13
    $region12: #{mlp_forward.1} parent=1 // pred_region
      _
    $region13: #{mlp_forward.1} parent=1 // pred_fallthru
      _
    // Predicated region
    $region14: #{mlp_forward.1} parent=1 // pred_check
      _
    $region15: #{mlp_forward.1} parent=1 // pred_check_branch
      %21 = sbr.rel (0) target = $region17
    $region16: #{mlp_forward.1} parent=1 // pred_region
      %s23 = ssub.s32 2048, 2048
      %24 = vsyncadd [#allocation3], %s23
      %s25 = sshll.u32 [#allocation2], 4
      %s26 = int_to_ptr.vmem [resolvable:$true] %s25
      %31 = dma.hbm_to_vmem [thread:$0]  %s3, 2048, %s26, [#allocation3], 128, 128, 8
    $region17: #{mlp_forward.1} parent=1 // pred_fallthru
      _
    // Predicated region
    $region18: #{mlp_forward.1} parent=1 // pred_check
      _
    $region19: #{mlp_forward.1} parent=1 // pred_check_branch
      %33 = sbr.rel (0) target = $region21
    $region20: #{mlp_forward.1} parent=1 // pred_region
      _
    $region21: #{mlp_forward.1} parent=1 // pred_fallthru
      _
    // Predicated region
    $region22: #{mlp_forward.1} parent=1 // pred_check
      _
    $region23: #{mlp_forward.1} parent=1 // pred_check_branch
      %35 = sbr.rel (0) target = $region25
    $region24: #{mlp_forward.1} parent=1 // pred_region
      %s37 = ssub.s32 2048, 2048
      %38 = vsyncadd [#allocation5], %s37
      %s39 = sshll.u32 [#allocation4], 4
      %s40 = int_to_ptr.vmem [resolvable:$true] %s39
      %45 = dma.hbm_to_vmem [thread:$0]  %s5, 2048, %s40, [#allocation5], 128, 128, 8
    $region25: #{mlp_forward.1} parent=1 // pred_fallthru
      _
    // Predicated region
    $region26: #{mlp_forward.1} parent=1 // pred_check
      _
    $region27: #{mlp_forward.1} parent=1 // pred_check_branch
      %47 = sbr.rel (0) target = $region29
    $region28: #{mlp_forward.1} parent=1 // pred_region
      _
    $region29: #{mlp_forward.1} parent=1 // pred_fallthru
      _
    // Predicated region
    $region30: #{mlp_forward.1} parent=1 // pred_check
      _
    $region31: #{mlp_forward.1} parent=1 // pred_check_branch
      %49 = sbr.rel (0) target = $region33
    $region32: #{mlp_forward.1} parent=1 // pred_region
      %50 = dma.done [#allocation3], 2048
    $region33: #{mlp_forward.1} parent=1 // pred_fallthru
      _
    // Predicated region
    $region34: #{mlp_forward.1} parent=1 // pred_check
      _
    $region35: #{mlp_forward.1} parent=1 // pred_check_branch
      %52 = sbr.rel (0) target = $region37
    $region36: #{mlp_forward.1} parent=1 // pred_region
      %53 = dma.done [#allocation5], 2048
    $region37: #{mlp_forward.1} parent=1 // pred_fallthru
      _
    %v54 = vld [vmem:[%s0] sm:$0xff]
    %v55 = vld [vmem:[%s0 + $0x8] sm:$0xff]
    %v56 = vld [vmem:[%s0 + $0x10] sm:$0xff]
    %v57 = vld [vmem:[%s0 + $0x18] sm:$0xff]
    %v58 = vld [vmem:[%s0 + $0x20] sm:$0xff]
    %v59 = vld [vmem:[%s0 + $0x28] sm:$0xff]
    %v60 = vld [vmem:[%s0 + $0x30] sm:$0xff]
    %v61 = vld [vmem:[%s0 + $0x38] sm:$0xff]
    %v62 = vld [vmem:[%s0 + $0x40] sm:$0xff]
    %v63 = vld [vmem:[%s0 + $0x48] sm:$0xff]
    %v64 = vld [vmem:[%s0 + $0x50] sm:$0xff]
    %v65 = vld [vmem:[%s0 + $0x58] sm:$0xff]
    %v66 = vld [vmem:[%s0 + $0x60] sm:$0xff]
    %v67 = vld [vmem:[%s0 + $0x68] sm:$0xff]
    %v68 = vld [vmem:[%s0 + $0x70] sm:$0xff]
    %v69 = vld [vmem:[%s0 + $0x78] sm:$0xff]
    %v70 = vld [vmem:[%s1] sm:$0xff]
    %v71 = vld [vmem:[%s1 + $0x8] sm:$0xff]
    %v72 = vld [vmem:[%s1 + $0x10] sm:$0xff]
    %v73 = vld [vmem:[%s1 + $0x18] sm:$0xff]
    %v74 = vld [vmem:[%s1 + $0x20] sm:$0xff]
    %v75 = vld [vmem:[%s1 + $0x28] sm:$0xff]
    %v76 = vld [vmem:[%s1 + $0x30] sm:$0xff]
    %v77 = vld [vmem:[%s1 + $0x38] sm:$0xff]
    %v78 = vld [vmem:[%s1 + $0x40] sm:$0xff]
    %v79 = vld [vmem:[%s1 + $0x48] sm:$0xff]
    %v80 = vld [vmem:[%s1 + $0x50] sm:$0xff]
    %v81 = vld [vmem:[%s1 + $0x58] sm:$0xff]
    %v82 = vld [vmem:[%s1 + $0x60] sm:$0xff]
    %v83 = vld [vmem:[%s1 + $0x68] sm:$0xff]
    %v84 = vld [vmem:[%s1 + $0x70] sm:$0xff]
    %v85 = vld [vmem:[%s1 + $0x78] sm:$0xff]
    %v86 = vld [vmem:[%s2] sm:$0x1]
    %v88 = vlaneseq
    %v89 = vshrl.u32 %v88, 7
    %v90 = vsub.s32 0, %v89
    %v91 = vrot.slane %v86, %v90
    %93 = vmatprep.subr.mxu0 0.0
    %94 = vmatpush1.msra.mxu0 %v85
    %95 = vmatprep.subr.mxu0 0.0
    %96 = vmatpush1.msra.mxu0 %v84
    %97 = vmatprep.subr.mxu0 0.0
    %98 = vmatpush1.msra.mxu0 %v83
    %99 = vmatprep.subr.mxu0 0.0
    %100 = vmatpush1.msra.mxu0 %v82
    %101 = vmatprep.subr.mxu0 0.0
    %102 = vmatpush1.msra.mxu0 %v81
    %103 = vmatprep.subr.mxu0 0.0
    %104 = vmatpush1.msra.mxu0 %v80
    %105 = vmatprep.subr.mxu0 0.0
    %106 = vmatpush1.msra.mxu0 %v79
    %107 = vmatprep.subr.mxu0 0.0
    %108 = vmatpush1.msra.mxu0 %v78
    %109 = vmatprep.subr.mxu0 0.0
    %110 = vmatpush1.msra.mxu0 %v77
    %111 = vmatprep.subr.mxu0 0.0
    %112 = vmatpush1.msra.mxu0 %v76
    %113 = vmatprep.subr.mxu0 0.0
    %114 = vmatpush1.msra.mxu0 %v75
    %115 = vmatprep.subr.mxu0 0.0
    %116 = vmatpush1.msra.mxu0 %v74
    %117 = vmatprep.subr.mxu0 0.0
    %118 = vmatpush1.msra.mxu0 %v73
    %119 = vmatprep.subr.mxu0 0.0
    %120 = vmatpush1.msra.mxu0 %v72
    %121 = vmatprep.subr.mxu0 0.0
    %122 = vmatpush1.msra.mxu0 %v71
    %123 = vmatprep.subr.mxu0 0.0
    %124 = vmatpush1.msra.mxu0 %v70
    %125 = vmatprep.subr.mxu0 0.0
    %126 = vmatpush2.msra.mxu0 0.0
    %127 = vmatprep.subr.mxu0 0.0
    %128 = vmatpush2.msra.mxu0 0.0
    %129 = vmatprep.subr.mxu0 0.0
    %130 = vmatpush2.msra.mxu0 0.0
    %131 = vmatprep.subr.mxu0 0.0
    %132 = vmatpush2.msra.mxu0 0.0
    %133 = vmatprep.subr.mxu0 0.0
    %134 = vmatpush2.msra.mxu0 0.0
    %135 = vmatprep.subr.mxu0 0.0
    %136 = vmatpush2.msra.mxu0 0.0
    %137 = vmatprep.subr.mxu0 0.0
    %138 = vmatpush2.msra.mxu0 0.0
    %139 = vmatprep.subr.mxu0 0.0
    %140 = vmatpush2.msra.mxu0 0.0
    %141 = vmatprep.subr.mxu0 0.0
    %142 = vmatpush2.msra.mxu0 0.0
    %143 = vmatprep.subr.mxu0 0.0
    %144 = vmatpush2.msra.mxu0 0.0
    %145 = vmatprep.subr.mxu0 0.0
    %146 = vmatpush2.msra.mxu0 0.0
    %147 = vmatprep.subr.mxu0 0.0
    %148 = vmatpush2.msra.mxu0 0.0
    %149 = vmatprep.subr.mxu0 0.0
    %150 = vmatpush2.msra.mxu0 0.0
    %151 = vmatprep.subr.mxu0 0.0
    %152 = vmatpush2.msra.mxu0 0.0
    %153 = vmatprep.subr.mxu0 0.0
    %154 = vmatpush2.msra.mxu0 0.0
    %155 = vmatprep.subr.mxu0 0.0
    %156 = vmatpush2.msra.mxu0 0.0
    %157 = vmatprep.mubr.f32.mxu0 0.0
    %158 = vmatmul.mubr.f32.gmra.mxu0 %v54
    %v159 = vpop.f32.mrf.mxu0
    %v160 = vadd.f32 %v91, %v159
    %v161 = vpop.f32.mrf.mxu0
    %162 = vmatprep.mubr.f32.mxu0 0.0
    %163 = vmatmul.mubr.f32.gmra.mxu0 %v55
    %v164 = vpop.f32.mrf.mxu0
    %v165 = vadd.f32 %v91, %v164
    %v166 = vpop.f32.mrf.mxu0
    %167 = vmatprep.mubr.f32.mxu0 0.0
    %168 = vmatmul.mubr.f32.gmra.mxu0 %v56
    %v169 = vpop.f32.mrf.mxu0
    %v170 = vadd.f32 %v91, %v169
    %v171 = vpop.f32.mrf.mxu0
    %172 = vmatprep.mubr.f32.mxu0 0.0
    %173 = vmatmul.mubr.f32.gmra.mxu0 %v57
    %v174 = vpop.f32.mrf.mxu0
    %v175 = vadd.f32 %v91, %v174
    %v176 = vpop.f32.mrf.mxu0
    %177 = vmatprep.mubr.f32.mxu0 0.0
    %178 = vmatmul.mubr.f32.gmra.mxu0 %v58
    %v179 = vpop.f32.mrf.mxu0
    %v180 = vadd.f32 %v91, %v179
    %v181 = vpop.f32.mrf.mxu0
    %182 = vmatprep.mubr.f32.mxu0 0.0
    %183 = vmatmul.mubr.f32.gmra.mxu0 %v59
    %v184 = vpop.f32.mrf.mxu0
    %v185 = vadd.f32 %v91, %v184
    %v186 = vpop.f32.mrf.mxu0
    %187 = vmatprep.mubr.f32.mxu0 0.0
    %188 = vmatmul.mubr.f32.gmra.mxu0 %v60
    %v189 = vpop.f32.mrf.mxu0
    %v190 = vadd.f32 %v91, %v189
    %v191 = vpop.f32.mrf.mxu0
    %192 = vmatprep.mubr.f32.mxu0 0.0
    %193 = vmatmul.mubr.f32.gmra.mxu0 %v61
    %v194 = vpop.f32.mrf.mxu0
    %v195 = vadd.f32 %v91, %v194
    %v196 = vpop.f32.mrf.mxu0
    %197 = vmatprep.mubr.f32.mxu0 0.0
    %198 = vmatmul.mubr.f32.gmra.mxu0 %v62
    %v199 = vpop.f32.mrf.mxu0
    %v200 = vadd.f32 %v91, %v199
    %v201 = vpop.f32.mrf.mxu0
    %202 = vmatprep.mubr.f32.mxu0 0.0
    %203 = vmatmul.mubr.f32.gmra.mxu0 %v63
    %v204 = vpop.f32.mrf.mxu0
    %v205 = vadd.f32 %v91, %v204
    %v206 = vpop.f32.mrf.mxu0
    %207 = vmatprep.mubr.f32.mxu0 0.0
    %208 = vmatmul.mubr.f32.gmra.mxu0 %v64
    %v209 = vpop.f32.mrf.mxu0
    %v210 = vadd.f32 %v91, %v209
    %v211 = vpop.f32.mrf.mxu0
    %212 = vmatprep.mubr.f32.mxu0 0.0
    %213 = vmatmul.mubr.f32.gmra.mxu0 %v65
    %v214 = vpop.f32.mrf.mxu0
    %v215 = vadd.f32 %v91, %v214
    %v216 = vpop.f32.mrf.mxu0
    %217 = vmatprep.mubr.f32.mxu0 0.0
    %218 = vmatmul.mubr.f32.gmra.mxu0 %v66
    %v219 = vpop.f32.mrf.mxu0
    %v220 = vadd.f32 %v91, %v219
    %v221 = vpop.f32.mrf.mxu0
    %222 = vmatprep.mubr.f32.mxu0 0.0
    %223 = vmatmul.mubr.f32.gmra.mxu0 %v67
    %v224 = vpop.f32.mrf.mxu0
    %v225 = vadd.f32 %v91, %v224
    %v226 = vpop.f32.mrf.mxu0
    %227 = vmatprep.mubr.f32.mxu0 0.0
    %228 = vmatmul.mubr.f32.gmra.mxu0 %v68
    %v229 = vpop.f32.mrf.mxu0
    %v230 = vadd.f32 %v91, %v229
    %v231 = vpop.f32.mrf.mxu0
    %232 = vmatprep.mubr.f32.mxu0 0.0
    %233 = vmatmul.mubr.f32.gmra.mxu0 %v69
    %v234 = vpop.f32.mrf.mxu0
    %v235 = vadd.f32 %v91, %v234
    %v236 = vpop.f32.mrf.mxu0
    %237 = vdwg.mxu0
    %v238 = vmax.f32 %v160, 0.0
    %v239 = vmax.f32 %v165, 0.0
    %v240 = vmax.f32 %v170, 0.0
    %v241 = vmax.f32 %v175, 0.0
    %v242 = vmax.f32 %v180, 0.0
    %v243 = vmax.f32 %v185, 0.0
    %v244 = vmax.f32 %v190, 0.0
    %v245 = vmax.f32 %v195, 0.0
    %v246 = vmax.f32 %v200, 0.0
    %v247 = vmax.f32 %v205, 0.0
    %v248 = vmax.f32 %v210, 0.0
    %v249 = vmax.f32 %v215, 0.0
    %v250 = vmax.f32 %v220, 0.0
    %v251 = vmax.f32 %v225, 0.0
    %v252 = vmax.f32 %v230, 0.0
    %v253 = vmax.f32 %v235, 0.0
    %v254 = vld [vmem:[#allocation2] sm:$0xff]
    %v255 = vld [vmem:[#allocation2 + $0x8] sm:$0xff]
    %v256 = vld [vmem:[#allocation2 + $0x10] sm:$0xff]
    %v257 = vld [vmem:[#allocation2 + $0x18] sm:$0xff]
    %v258 = vld [vmem:[#allocation2 + $0x20] sm:$0xff]
    %v259 = vld [vmem:[#allocation2 + $0x28] sm:$0xff]
    %v260 = vld [vmem:[#allocation2 + $0x30] sm:$0xff]
    %v261 = vld [vmem:[#allocation2 + $0x38] sm:$0xff]
    %v262 = vld [vmem:[#allocation2 + $0x40] sm:$0xff]
    %v263 = vld [vmem:[#allocation2 + $0x48] sm:$0xff]
    %v264 = vld [vmem:[#allocation2 + $0x50] sm:$0xff]
    %v265 = vld [vmem:[#allocation2 + $0x58] sm:$0xff]
    %v266 = vld [vmem:[#allocation2 + $0x60] sm:$0xff]
    %v267 = vld [vmem:[#allocation2 + $0x68] sm:$0xff]
    %v268 = vld [vmem:[#allocation2 + $0x70] sm:$0xff]
    %v269 = vld [vmem:[#allocation2 + $0x78] sm:$0xff]
    %v270 = vld [vmem:[%s4] sm:$0x1]
    %v272 = vlaneseq
    %v273 = vshrl.u32 %v272, 7
    %v274 = vsub.s32 0, %v273
    %v275 = vrot.slane %v270, %v274
    %277 = vmatprep.subr.mxu0 0.0
    %278 = vmatpush1.msra.mxu0 %v269
    %279 = vmatprep.subr.mxu0 0.0
    %280 = vmatpush1.msra.mxu0 %v268
    %281 = vmatprep.subr.mxu0 0.0
    %282 = vmatpush1.msra.mxu0 %v267
    %283 = vmatprep.subr.mxu0 0.0
    %284 = vmatpush1.msra.mxu0 %v266
    %285 = vmatprep.subr.mxu0 0.0
    %286 = vmatpush1.msra.mxu0 %v265
    %287 = vmatprep.subr.mxu0 0.0
    %288 = vmatpush1.msra.mxu0 %v264
    %289 = vmatprep.subr.mxu0 0.0
    %290 = vmatpush1.msra.mxu0 %v263
    %291 = vmatprep.subr.mxu0 0.0
    %292 = vmatpush1.msra.mxu0 %v262
    %293 = vmatprep.subr.mxu0 0.0
    %294 = vmatpush1.msra.mxu0 %v261
    %295 = vmatprep.subr.mxu0 0.0
    %296 = vmatpush1.msra.mxu0 %v260
    %297 = vmatprep.subr.mxu0 0.0
    %298 = vmatpush1.msra.mxu0 %v259
    %299 = vmatprep.subr.mxu0 0.0
    %300 = vmatpush1.msra.mxu0 %v258
    %301 = vmatprep.subr.mxu0 0.0
    %302 = vmatpush1.msra.mxu0 %v257
    %303 = vmatprep.subr.mxu0 0.0
    %304 = vmatpush1.msra.mxu0 %v256
    %305 = vmatprep.subr.mxu0 0.0
    %306 = vmatpush1.msra.mxu0 %v255
    %307 = vmatprep.subr.mxu0 0.0
    %308 = vmatpush1.msra.mxu0 %v254
    %309 = vmatprep.subr.mxu0 0.0
    %310 = vmatpush2.msra.mxu0 0.0
    %311 = vmatprep.subr.mxu0 0.0
    %312 = vmatpush2.msra.mxu0 0.0
    %313 = vmatprep.subr.mxu0 0.0
    %314 = vmatpush2.msra.mxu0 0.0
    %315 = vmatprep.subr.mxu0 0.0
    %316 = vmatpush2.msra.mxu0 0.0
    %317 = vmatprep.subr.mxu0 0.0
    %318 = vmatpush2.msra.mxu0 0.0
    %319 = vmatprep.subr.mxu0 0.0
    %320 = vmatpush2.msra.mxu0 0.0
    %321 = vmatprep.subr.mxu0 0.0
    %322 = vmatpush2.msra.mxu0 0.0
    %323 = vmatprep.subr.mxu0 0.0
    %324 = vmatpush2.msra.mxu0 0.0
    %325 = vmatprep.subr.mxu0 0.0
    %326 = vmatpush2.msra.mxu0 0.0
    %327 = vmatprep.subr.mxu0 0.0
    %328 = vmatpush2.msra.mxu0 0.0
    %329 = vmatprep.subr.mxu0 0.0
    %330 = vmatpush2.msra.mxu0 0.0
    %331 = vmatprep.subr.mxu0 0.0
    %332 = vmatpush2.msra.mxu0 0.0
    %333 = vmatprep.subr.mxu0 0.0
    %334 = vmatpush2.msra.mxu0 0.0
    %335 = vmatprep.subr.mxu0 0.0
    %336 = vmatpush2.msra.mxu0 0.0
    %337 = vmatprep.subr.mxu0 0.0
    %338 = vmatpush2.msra.mxu0 0.0
    %339 = vmatprep.subr.mxu0 0.0
    %340 = vmatpush2.msra.mxu0 0.0
    %341 = vmatprep.mubr.f32.mxu0 0.0
    %342 = vmatmul.mubr.f32.gmra.mxu0 %v238
    %v343 = vpop.f32.mrf.mxu0
    %v344 = vadd.f32 %v275, %v343
    %v345 = vpop.f32.mrf.mxu0
    %346 = vmatprep.mubr.f32.mxu0 0.0
    %347 = vmatmul.mubr.f32.gmra.mxu0 %v239
    %v348 = vpop.f32.mrf.mxu0
    %v349 = vadd.f32 %v275, %v348
    %v350 = vpop.f32.mrf.mxu0
    %351 = vmatprep.mubr.f32.mxu0 0.0
    %352 = vmatmul.mubr.f32.gmra.mxu0 %v240
    %v353 = vpop.f32.mrf.mxu0
    %v354 = vadd.f32 %v275, %v353
    %v355 = vpop.f32.mrf.mxu0
    %356 = vmatprep.mubr.f32.mxu0 0.0
    %357 = vmatmul.mubr.f32.gmra.mxu0 %v241
    %v358 = vpop.f32.mrf.mxu0
    %v359 = vadd.f32 %v275, %v358
    %v360 = vpop.f32.mrf.mxu0
    %361 = vmatprep.mubr.f32.mxu0 0.0
    %362 = vmatmul.mubr.f32.gmra.mxu0 %v242
    %v363 = vpop.f32.mrf.mxu0
    %v364 = vadd.f32 %v275, %v363
    %v365 = vpop.f32.mrf.mxu0
    %366 = vmatprep.mubr.f32.mxu0 0.0
    %367 = vmatmul.mubr.f32.gmra.mxu0 %v243
    %v368 = vpop.f32.mrf.mxu0
    %v369 = vadd.f32 %v275, %v368
    %v370 = vpop.f32.mrf.mxu0
    %371 = vmatprep.mubr.f32.mxu0 0.0
    %372 = vmatmul.mubr.f32.gmra.mxu0 %v244
    %v373 = vpop.f32.mrf.mxu0
    %v374 = vadd.f32 %v275, %v373
    %v375 = vpop.f32.mrf.mxu0
    %376 = vmatprep.mubr.f32.mxu0 0.0
    %377 = vmatmul.mubr.f32.gmra.mxu0 %v245
    %v378 = vpop.f32.mrf.mxu0
    %v379 = vadd.f32 %v275, %v378
    %v380 = vpop.f32.mrf.mxu0
    %381 = vmatprep.mubr.f32.mxu0 0.0
    %382 = vmatmul.mubr.f32.gmra.mxu0 %v246
    %v383 = vpop.f32.mrf.mxu0
    %v384 = vadd.f32 %v275, %v383
    %v385 = vpop.f32.mrf.mxu0
    %386 = vmatprep.mubr.f32.mxu0 0.0
    %387 = vmatmul.mubr.f32.gmra.mxu0 %v247
    %v388 = vpop.f32.mrf.mxu0
    %v389 = vadd.f32 %v275, %v388
    %v390 = vpop.f32.mrf.mxu0
    %391 = vmatprep.mubr.f32.mxu0 0.0
    %392 = vmatmul.mubr.f32.gmra.mxu0 %v248
    %v393 = vpop.f32.mrf.mxu0
    %v394 = vadd.f32 %v275, %v393
    %v395 = vpop.f32.mrf.mxu0
    %396 = vmatprep.mubr.f32.mxu0 0.0
    %397 = vmatmul.mubr.f32.gmra.mxu0 %v249
    %v398 = vpop.f32.mrf.mxu0
    %v399 = vadd.f32 %v275, %v398
    %v400 = vpop.f32.mrf.mxu0
    %401 = vmatprep.mubr.f32.mxu0 0.0
    %402 = vmatmul.mubr.f32.gmra.mxu0 %v250
    %v403 = vpop.f32.mrf.mxu0
    %v404 = vadd.f32 %v275, %v403
    %v405 = vpop.f32.mrf.mxu0
    %406 = vmatprep.mubr.f32.mxu0 0.0
    %407 = vmatmul.mubr.f32.gmra.mxu0 %v251
    %v408 = vpop.f32.mrf.mxu0
    %v409 = vadd.f32 %v275, %v408
    %v410 = vpop.f32.mrf.mxu0
    %411 = vmatprep.mubr.f32.mxu0 0.0
    %412 = vmatmul.mubr.f32.gmra.mxu0 %v252
    %v413 = vpop.f32.mrf.mxu0
    %v414 = vadd.f32 %v275, %v413
    %v415 = vpop.f32.mrf.mxu0
    %416 = vmatprep.mubr.f32.mxu0 0.0
    %417 = vmatmul.mubr.f32.gmra.mxu0 %v253
    %v418 = vpop.f32.mrf.mxu0
    %v419 = vadd.f32 %v275, %v418
    %v420 = vpop.f32.mrf.mxu0
    %421 = vdwg.mxu0
    %v422 = vmax.f32 %v344, 0.0
    %v423 = vmax.f32 %v349, 0.0
    %v424 = vmax.f32 %v354, 0.0
    %v425 = vmax.f32 %v359, 0.0
    %v426 = vmax.f32 %v364, 0.0
    %v427 = vmax.f32 %v369, 0.0
    %v428 = vmax.f32 %v374, 0.0
    %v429 = vmax.f32 %v379, 0.0
    %v430 = vmax.f32 %v384, 0.0
    %v431 = vmax.f32 %v389, 0.0
    %v432 = vmax.f32 %v394, 0.0
    %v433 = vmax.f32 %v399, 0.0
    %v434 = vmax.f32 %v404, 0.0
    %v435 = vmax.f32 %v409, 0.0
    %v436 = vmax.f32 %v414, 0.0
    %v437 = vmax.f32 %v419, 0.0
    %v438 = vld [vmem:[#allocation4] sm:$0xff]
    %v439 = vld [vmem:[#allocation4 + $0x8] sm:$0xff]
    %v440 = vld [vmem:[#allocation4 + $0x10] sm:$0xff]
    %v441 = vld [vmem:[#allocation4 + $0x18] sm:$0xff]
    %v442 = vld [vmem:[#allocation4 + $0x20] sm:$0xff]
    %v443 = vld [vmem:[#allocation4 + $0x28] sm:$0xff]
    %v444 = vld [vmem:[#allocation4 + $0x30] sm:$0xff]
    %v445 = vld [vmem:[#allocation4 + $0x38] sm:$0xff]
    %v446 = vld [vmem:[#allocation4 + $0x40] sm:$0xff]
    %v447 = vld [vmem:[#allocation4 + $0x48] sm:$0xff]
    %v448 = vld [vmem:[#allocation4 + $0x50] sm:$0xff]
    %v449 = vld [vmem:[#allocation4 + $0x58] sm:$0xff]
    %v450 = vld [vmem:[#allocation4 + $0x60] sm:$0xff]
    %v451 = vld [vmem:[#allocation4 + $0x68] sm:$0xff]
    %v452 = vld [vmem:[#allocation4 + $0x70] sm:$0xff]
    %v453 = vld [vmem:[#allocation4 + $0x78] sm:$0xff]
    %v454 = vld [vmem:[%s6] sm:$0x1]
    %v456 = vlaneseq
    %v457 = vshrl.u32 %v456, 7
    %v458 = vsub.s32 0, %v457
    %v459 = vrot.slane %v454, %v458
    %461 = vmatprep.subr.mxu0 0.0
    %462 = vmatpush1.msra.mxu0 %v453
    %463 = vmatprep.subr.mxu0 0.0
    %464 = vmatpush1.msra.mxu0 %v452
    %465 = vmatprep.subr.mxu0 0.0
    %466 = vmatpush1.msra.mxu0 %v451
    %467 = vmatprep.subr.mxu0 0.0
    %468 = vmatpush1.msra.mxu0 %v450
    %469 = vmatprep.subr.mxu0 0.0
    %470 = vmatpush1.msra.mxu0 %v449
    %471 = vmatprep.subr.mxu0 0.0
    %472 = vmatpush1.msra.mxu0 %v448
    %473 = vmatprep.subr.mxu0 0.0
    %474 = vmatpush1.msra.mxu0 %v447
    %475 = vmatprep.subr.mxu0 0.0
    %476 = vmatpush1.msra.mxu0 %v446
    %477 = vmatprep.subr.mxu0 0.0
    %478 = vmatpush1.msra.mxu0 %v445
    %479 = vmatprep.subr.mxu0 0.0
    %480 = vmatpush1.msra.mxu0 %v444
    %481 = vmatprep.subr.mxu0 0.0
    %482 = vmatpush1.msra.mxu0 %v443
    %483 = vmatprep.subr.mxu0 0.0
    %484 = vmatpush1.msra.mxu0 %v442
    %485 = vmatprep.subr.mxu0 0.0
    %486 = vmatpush1.msra.mxu0 %v441
    %487 = vmatprep.subr.mxu0 0.0
    %488 = vmatpush1.msra.mxu0 %v440
    %489 = vmatprep.subr.mxu0 0.0
    %490 = vmatpush1.msra.mxu0 %v439
    %491 = vmatprep.subr.mxu0 0.0
    %492 = vmatpush1.msra.mxu0 %v438
    %493 = vmatprep.subr.mxu0 0.0
    %494 = vmatpush2.msra.mxu0 0.0
    %495 = vmatprep.subr.mxu0 0.0
    %496 = vmatpush2.msra.mxu0 0.0
    %497 = vmatprep.subr.mxu0 0.0
    %498 = vmatpush2.msra.mxu0 0.0
    %499 = vmatprep.subr.mxu0 0.0
    %500 = vmatpush2.msra.mxu0 0.0
    %501 = vmatprep.subr.mxu0 0.0
    %502 = vmatpush2.msra.mxu0 0.0
    %503 = vmatprep.subr.mxu0 0.0
    %504 = vmatpush2.msra.mxu0 0.0
    %505 = vmatprep.subr.mxu0 0.0
    %506 = vmatpush2.msra.mxu0 0.0
    %507 = vmatprep.subr.mxu0 0.0
    %508 = vmatpush2.msra.mxu0 0.0
    %509 = vmatprep.subr.mxu0 0.0
    %510 = vmatpush2.msra.mxu0 0.0
    %511 = vmatprep.subr.mxu0 0.0
    %512 = vmatpush2.msra.mxu0 0.0
    %513 = vmatprep.subr.mxu0 0.0
    %514 = vmatpush2.msra.mxu0 0.0
    %515 = vmatprep.subr.mxu0 0.0
    %516 = vmatpush2.msra.mxu0 0.0
    %517 = vmatprep.subr.mxu0 0.0
    %518 = vmatpush2.msra.mxu0 0.0
    %519 = vmatprep.subr.mxu0 0.0
    %520 = vmatpush2.msra.mxu0 0.0
    %521 = vmatprep.subr.mxu0 0.0
    %522 = vmatpush2.msra.mxu0 0.0
    %523 = vmatprep.subr.mxu0 0.0
    %524 = vmatpush2.msra.mxu0 0.0
    %525 = vmatprep.mubr.f32.mxu0 0.0
    %526 = vmatmul.mubr.f32.gmra.mxu0 %v422
    %v527 = vpop.f32.mrf.mxu0
    %v528 = vadd.f32 %v459, %v527
    %v529 = vpop.f32.mrf.mxu0
    %530 = vmatprep.mubr.f32.mxu0 0.0
    %531 = vmatmul.mubr.f32.gmra.mxu0 %v423
    %v532 = vpop.f32.mrf.mxu0
    %v533 = vadd.f32 %v459, %v532
    %v534 = vpop.f32.mrf.mxu0
    %535 = vmatprep.mubr.f32.mxu0 0.0
    %536 = vmatmul.mubr.f32.gmra.mxu0 %v424
    %v537 = vpop.f32.mrf.mxu0
    %v538 = vadd.f32 %v459, %v537
    %v539 = vpop.f32.mrf.mxu0
    %540 = vmatprep.mubr.f32.mxu0 0.0
    %541 = vmatmul.mubr.f32.gmra.mxu0 %v425
    %v542 = vpop.f32.mrf.mxu0
    %v543 = vadd.f32 %v459, %v542
    %v544 = vpop.f32.mrf.mxu0
    %545 = vmatprep.mubr.f32.mxu0 0.0
    %546 = vmatmul.mubr.f32.gmra.mxu0 %v426
    %v547 = vpop.f32.mrf.mxu0
    %v548 = vadd.f32 %v459, %v547
    %v549 = vpop.f32.mrf.mxu0
    %550 = vmatprep.mubr.f32.mxu0 0.0
    %551 = vmatmul.mubr.f32.gmra.mxu0 %v427
    %v552 = vpop.f32.mrf.mxu0
    %v553 = vadd.f32 %v459, %v552
    %v554 = vpop.f32.mrf.mxu0
    %555 = vmatprep.mubr.f32.mxu0 0.0
    %556 = vmatmul.mubr.f32.gmra.mxu0 %v428
    %v557 = vpop.f32.mrf.mxu0
    %v558 = vadd.f32 %v459, %v557
    %v559 = vpop.f32.mrf.mxu0
    %560 = vmatprep.mubr.f32.mxu0 0.0
    %561 = vmatmul.mubr.f32.gmra.mxu0 %v429
    %v562 = vpop.f32.mrf.mxu0
    %v563 = vadd.f32 %v459, %v562
    %v564 = vpop.f32.mrf.mxu0
    %565 = vmatprep.mubr.f32.mxu0 0.0
    %566 = vmatmul.mubr.f32.gmra.mxu0 %v430
    %v567 = vpop.f32.mrf.mxu0
    %v568 = vadd.f32 %v459, %v567
    %v569 = vpop.f32.mrf.mxu0
    %570 = vmatprep.mubr.f32.mxu0 0.0
    %571 = vmatmul.mubr.f32.gmra.mxu0 %v431
    %v572 = vpop.f32.mrf.mxu0
    %v573 = vadd.f32 %v459, %v572
    %v574 = vpop.f32.mrf.mxu0
    %575 = vmatprep.mubr.f32.mxu0 0.0
    %576 = vmatmul.mubr.f32.gmra.mxu0 %v432
    %v577 = vpop.f32.mrf.mxu0
    %v578 = vadd.f32 %v459, %v577
    %v579 = vpop.f32.mrf.mxu0
    %580 = vmatprep.mubr.f32.mxu0 0.0
    %581 = vmatmul.mubr.f32.gmra.mxu0 %v433
    %v582 = vpop.f32.mrf.mxu0
    %v583 = vadd.f32 %v459, %v582
    %v584 = vpop.f32.mrf.mxu0
    %585 = vmatprep.mubr.f32.mxu0 0.0
    %586 = vmatmul.mubr.f32.gmra.mxu0 %v434
    %v587 = vpop.f32.mrf.mxu0
    %v588 = vadd.f32 %v459, %v587
    %v589 = vpop.f32.mrf.mxu0
    %590 = vmatprep.mubr.f32.mxu0 0.0
    %591 = vmatmul.mubr.f32.gmra.mxu0 %v435
    %v592 = vpop.f32.mrf.mxu0
    %v593 = vadd.f32 %v459, %v592
    %v594 = vpop.f32.mrf.mxu0
    %595 = vmatprep.mubr.f32.mxu0 0.0
    %596 = vmatmul.mubr.f32.gmra.mxu0 %v436
    %v597 = vpop.f32.mrf.mxu0
    %v598 = vadd.f32 %v459, %v597
    %v599 = vpop.f32.mrf.mxu0
    %600 = vmatprep.mubr.f32.mxu0 0.0
    %601 = vmatmul.mubr.f32.gmra.mxu0 %v437
    %v602 = vpop.f32.mrf.mxu0
    %v603 = vadd.f32 %v459, %v602
    %v604 = vpop.f32.mrf.mxu0
    %605 = vdwg.mxu0
    %606 = vst [vmem:[%s7] sm:$0xff] %v528
    %607 = vst [vmem:[%s7 + $0x8] sm:$0xff] %v533
    %608 = vst [vmem:[%s7 + $0x10] sm:$0xff] %v538
    %609 = vst [vmem:[%s7 + $0x18] sm:$0xff] %v543
    %610 = vst [vmem:[%s7 + $0x20] sm:$0xff] %v548
    %611 = vst [vmem:[%s7 + $0x28] sm:$0xff] %v553
    %612 = vst [vmem:[%s7 + $0x30] sm:$0xff] %v558
    %613 = vst [vmem:[%s7 + $0x38] sm:$0xff] %v563
    %614 = vst [vmem:[%s7 + $0x40] sm:$0xff] %v568
    %615 = vst [vmem:[%s7 + $0x48] sm:$0xff] %v573
    %616 = vst [vmem:[%s7 + $0x50] sm:$0xff] %v578
    %617 = vst [vmem:[%s7 + $0x58] sm:$0xff] %v583
    %618 = vst [vmem:[%s7 + $0x60] sm:$0xff] %v588
    %619 = vst [vmem:[%s7 + $0x68] sm:$0xff] %v593
    %620 = vst [vmem:[%s7 + $0x70] sm:$0xff] %v598
    %621 = vst [vmem:[%s7 + $0x78] sm:$0xff] %v603
    // Predicated region
    $region38: #{mlp_forward.1} parent=1 // pred_check
      _
    $region39: #{mlp_forward.1} parent=1 // pred_check_branch
      %623 = sbr.rel (0) target = $region41
    $region40: #{mlp_forward.1} parent=1 // pred_region
      _
    $region41: #{mlp_forward.1} parent=1 // pred_fallthru
      _
    // Predicated region
    $region42: #{mlp_forward.1} parent=1 // pred_check
      _
    $region43: #{mlp_forward.1} parent=1 // pred_check_branch
      %625 = sbr.rel (0) target = $region45
    $region44: #{mlp_forward.1} parent=1 // pred_region
      _
    $region45: #{mlp_forward.1} parent=1 // pred_fallthru
      _
    %626 = vsyncpa [#allocation3], 1
    %627 = vsyncpa [#allocation5], 1

</llo_original>
